<compile_context>
chip_gen: v7x
topology: tpu7x:2x2x1
jax: 0.10.0
libtpu: 0.0.40
codegen_flags: <defaults>
</compile_context>

<pallas_src>
import jax
import jax.numpy as jnp
from jax.experimental import pallas as pl
from jax.experimental.pallas import tpu as pltpu

# Target matmul M-rows per grid step (128 saturates the v5e MXU and is a safe
# choice on v6e/v7x as well; bump to 256 if tuning specifically for v6e/v7x).
_TARGET_ROWS = 128


# ---------------------------------------------------------------------------
# Fused kernel: one grid step == B_TILE images stacked along the row dimension.
# Columns are lane-dense: (w * C + c).  Rows are the stacked padded layout:
# image i occupies rows [i*S, (i+1)*S) with row i*S a zero border, rows
# i*S+1 .. i*S+H the image, and the remaining rows zero.
# ---------------------------------------------------------------------------
def _sqout_fused_kernel(x_ref, w0_ref, wb1_ref, wb2_ref, sh_ref, mask_ref,
                        o_ref, xpad_ref):
    Mp = xpad_ref.shape[0]          # B_TILE * S  (stacked padded rows)
    Mv = Mp - 2                     # rows for which the 3-tap conv is computed

    mask = mask_ref[...]                                  # (Mp, 1) f32, 1 on image rows

    # ---- conv0: 1x1 conv (BN scale pre-folded into the weights) + shift + ReLU ----
    # bf16 operands, f32 accumulation; border rows re-zeroed by the mask.
    x = x_ref[...].astype(jnp.bfloat16)                   # (Mp, W*Cin)
    x0 = jnp.dot(x, w0_ref[...], preferred_element_type=jnp.float32)
    x0 = jnp.maximum(x0 + sh_ref[0:1, :], 0.0) * mask     # (Mp, W*Cout) f32

    # Full-tile store: the scratch is completely overwritten every step, so no
    # zero-init is ever required (separator rows are zero because of the mask).
    xpad_ref[...] = x0

    # ---- conv1: 3x3 SAME conv as 3 banded matmuls over the stacked padded rows ----
    # Valid outputs for image i, row h sit at accumulator row i*S + h; the few
    # rows at separator positions are junk and are masked away below.
    acc = jnp.zeros((Mv, x0.shape[1]), jnp.float32)
    for kh in range(3):
        acc = acc + jnp.dot(xpad_ref[kh:kh + Mv, :].astype(jnp.bfloat16),
                            wb1_ref[kh], preferred_element_type=jnp.float32)
    x1 = jnp.maximum(acc + sh_ref[1:2, :], 0.0)           # (Mv, W*Cout) f32

    # ---- fused residual: conv2 input = x0 + x1, written into the interior rows ----
    # x0 is kept live (no scratch read-back); the mask keeps separator rows zero.
    xpad_ref[1:Mp - 1, :] = (x0[1:Mp - 1, :] + x1) * mask[1:Mp - 1, :]

    # ---- conv2: 3x3 SAME conv + shift + ReLU ----
    acc2 = jnp.zeros((Mv, x0.shape[1]), jnp.float32)
    for kh in range(3):
        acc2 = acc2 + jnp.dot(xpad_ref[kh:kh + Mv, :].astype(jnp.bfloat16),
                              wb2_ref[kh], preferred_element_type=jnp.float32)
    y = jnp.maximum(acc2 + sh_ref[2:3, :], 0.0)

    # Lane-dense output in the same stacked-padded layout; rows i*S + h (h < H)
    # are valid, the rest is discarded by the wrapper.
    o_ref[0:Mv, :] = y.astype(o_ref.dtype)


# ---------------------------------------------------------------------------
# Wrapper-side weight plumbing (tiny, parameter-only transforms)
# ---------------------------------------------------------------------------
def _block_diag_1x1(w0, W):
    """1x1 conv (Cin,Cout) -> block-diagonal (W*Cin, W*Cout) for lane-dense matmul."""
    Cin, Cout = w0.shape
    eye = jnp.eye(W, dtype=w0.dtype)
    A = jnp.einsum("pw,io->piwo", eye, w0)               # (W, Cin, W, Cout)
    return A.reshape(W * Cin, W * Cout)


def _banded_3x3(w3, W):
    """3x3 HWIO conv weights -> per-kh banded matrices (3, W*Cin, W*Cout).

    out[h, w*Cout+co] = sum_kh xpad[h+kh, :] @ Wb[kh], with SAME padding along W
    folded into the band structure (H padding comes from the zero scratch rows).
    """
    _, _, Cin, Cout = w3.shape
    p = jnp.arange(W)[:, None]                            # input column index
    w = jnp.arange(W)[None, :]                            # output column index
    masks = jnp.stack([(p == w + kw - 1) for kw in range(3)],
                      axis=0).astype(w3.dtype)            # (3, W, W)
    A = jnp.einsum("kpw,hkio->hpiwo", masks, w3)          # (3, W, Cin, W, Cout)
    return A.reshape(3, W * Cin, W * Cout)


def _round_up(x, m):
    return ((x + m - 1) // m) * m


def _pick_b_tile(N, S):
    """Largest divisor of N whose stacked rows fit the MXU M target."""
    max_bt = max(1, min(N, _TARGET_ROWS // S))
    for bt in range(max_bt, 0, -1):
        if N % bt == 0:
            return bt
    return 1


def sq_out_forward(x_nchw, p):
    """Pallas implementation of sqOut.forward. Input/output are NCHW (PyTorch)."""
    N, Cin, H, W = x_nchw.shape
    Cout = p["w0"].shape[1]
    WCin, WCout = W * Cin, W * Cout
    S = _round_up(H + 2, 8)                               # 8-aligned per-image row stride

    # NCHW -> lane-dense rows (N, H, W*Cin); NHWC-native callers can skip this.
    x3 = jnp.transpose(x_nchw, (0, 2, 3, 1)).reshape(N, H, WCin)
    # Fold the SAME H-padding into the layout: 1 zero row above, S-H-1 below each
    # image, then flatten to the stacked-padded row layout (N*S, W*Cin).
    xp = jnp.pad(x3, ((0, 0), (1, S - H - 1), (0, 0))).reshape(N * S, WCin)

    B_TILE = _pick_b_tile(N, S)
    Mp = B_TILE * S

    # BN scale folded into the conv weights (per output column), bias folded into
    # the BN shift; weights pre-cast to bf16 for full-rate MXU.
    scale0 = jnp.tile(p["s0"], W)
    scale1 = jnp.tile(p["s1"], W)
    scale2 = jnp.tile(p["s2"], W)
    w0b = (_block_diag_1x1(p["w0"], W) * scale0[None, :]).astype(jnp.bfloat16)
    wb1 = (_banded_3x3(p["w1"], W) * scale1[None, None, :]).astype(jnp.bfloat16)
    wb2 = (_banded_3x3(p["w2"], W) * scale2[None, None, :]).astype(jnp.bfloat16)
    shifts = jnp.stack([jnp.tile(p["b0"] * p["s0"] + p["t0"], W),
                        jnp.tile(p["b1"] * p["s1"] + p["t1"], W),
                        jnp.tile(p["b2"] * p["s2"] + p["t2"], W)],
                       axis=0).astype(jnp.float32)        # (3, W*Cout)

    # Row mask for the stacked-padded layout: 1 on image rows, 0 on border rows.
    r = jnp.arange(Mp) % S
    mask = ((r >= 1) & (r <= H)).astype(jnp.float32)[:, None]   # (Mp, 1)

    out_flat = pl.pallas_call(
        _sqout_fused_kernel,
        out_shape=jax.ShapeDtypeStruct((N * S, WCout), x_nchw.dtype),
        grid=(N // B_TILE,),
        in_specs=[
            pl.BlockSpec((Mp, WCin), lambda n: (n, 0)),          # stacked input rows
            pl.BlockSpec((WCin, WCout), lambda n: (0, 0)),       # 1x1 block-diag W (bf16)
            pl.BlockSpec((3, WCout, WCout), lambda n: (0, 0, 0)),  # conv1 banded W (bf16)
            pl.BlockSpec((3, WCout, WCout), lambda n: (0, 0, 0)),  # conv2 banded W (bf16)
            pl.BlockSpec((3, WCout), lambda n: (0, 0)),          # merged shifts
            pl.BlockSpec((Mp, 1), lambda n: (0, 0)),             # row mask
        ],
        out_specs=pl.BlockSpec((Mp, WCout), lambda n: (n, 0)),
        scratch_shapes=[pltpu.VMEM((Mp, WCout), jnp.float32)],
        compiler_params=pltpu.CompilerParams(
            dimension_semantics=("parallel",)),
    )(xp, w0b, wb1, wb2, shifts, mask)

    # Drop the padded/separator rows, back to NCHW.
    out = out_flat.reshape(N, S, W, Cout)[:, :H]
    return jnp.transpose(out, (0, 3, 1, 2))


# ---------------------------------------------------------------------------
# Pure-JAX reference (for correctness check)
# ---------------------------------------------------------------------------
def _ref_forward(x_nchw, p):
    x = jnp.transpose(x_nchw, (0, 2, 3, 1))

    def conv(xh, w, b):
        y = jax.lax.conv_general_dilated(
            xh, w, (1, 1), "SAME", dimension_numbers=("NHWC", "HWIO", "NHWC"))
        return y + b[None, None, None, :]

    def bn_relu(y, s, t):
        return jnp.maximum(y * s[None, None, None, :] + t[None, None, None, :], 0.0)

    cin, cout = p["w0"].shape
    x0 = bn_relu(conv(x, p["w0"].reshape(1, 1, cin, cout), p["b0"]), p["s0"], p["t0"])
    x1 = bn_relu(conv(x0, p["w1"], p["b1"]), p["s1"], p["t1"])
    out = bn_relu(conv(x0 + x1, p["w2"], p["b2"]), p["s2"], p["t2"])
    return jnp.transpose(out, (0, 3, 1, 2))


# ---------------------------------------------------------------------------
def _init_params(key, in_ch, out_ch):
    ks = jax.random.split(key, 12)

    def bn(i):
        # Folded inference-mode BatchNorm: scale = gamma/sqrt(var+eps),
        # shift = beta - mean*scale (random values to exercise the path).
        scale = 1.0 + 0.1 * jax.random.normal(ks[i], (out_ch,), jnp.float32)
        shift = 0.1 * jax.random.normal(ks[i + 1], (out_ch,), jnp.float32)
        return scale, shift

    s0, t0 = bn(6)
    s1, t1 = bn(8)
    s2, t2 = bn(10)
    return {
        "w0": 0.2 * jax.random.normal(ks[0], (in_ch, out_ch), jnp.float32),
        "b0": 0.1 * jax.random.normal(ks[1], (out_ch,), jnp.float32),
        "w1": 0.2 * jax.random.normal(ks[2], (3, 3, out_ch, out_ch), jnp.float32),
        "b1": 0.1 * jax.random.normal(ks[3], (out_ch,), jnp.float32),
        "w2": 0.2 * jax.random.normal(ks[4], (3, 3, out_ch, out_ch), jnp.float32),
        "b2": 0.1 * jax.random.normal(ks[5], (out_ch,), jnp.float32),
        "s0": s0, "t0": t0, "s1": s1, "t1": t1, "s2": s2, "t2": t2,
    }


if __name__ == "__main__":
    key = jax.random.PRNGKey(0)
    k_x, k_p = jax.random.split(key)

    N, IN_CH, OUT_CH, H, W = 2, 4, 8, 16, 16
    x = jax.random.normal(k_x, (N, IN_CH, H, W), jnp.float32)   # NCHW like PyTorch
    params = _init_params(k_p, IN_CH, OUT_CH)

    out = jax.block_until_ready(jax.jit(sq_out_forward)(x, params))
    ref = jax.block_until_ready(_ref_forward(x, params))

    assert out.shape == (N, OUT_CH, H, W), out.shape
    # bf16 matmul operands (f32 accumulation) -> looser tolerance than a pure-f32 run.
    max_err = float(jnp.max(jnp.abs(out - ref)))
    assert jnp.allclose(out, ref, atol=3e-2, rtol=3e-2), max_err
    print("KERNEL_OK")
</pallas_src>

<mosaic_0001>
module attributes {stable_mosaic.version = 11 : i64} {
  func.func @_sqout_fused_kernel(%arg0: i32, %arg1: memref<48x64xf32, #tpu.memory_space<vmem>>, %arg2: memref<64x128xbf16, #tpu.memory_space<vmem>>, %arg3: memref<3x128x128xbf16, #tpu.memory_space<vmem>>, %arg4: memref<3x128x128xbf16, #tpu.memory_space<vmem>>, %arg5: memref<3x128xf32, #tpu.memory_space<vmem>>, %arg6: memref<48x1xf32, #tpu.memory_space<vmem>>, %arg7: memref<48x128xf32, #tpu.memory_space<vmem>>, %arg8: memref<48x128xf32, #tpu.memory_space<vmem>>) attributes {dimension_semantics = [#tpu.dimension_semantics<parallel>], iteration_bounds = array<i64: 1>, scalar_prefetch = 0 : i64, scratch_operands = 1 : i64, tpu.core_type = #tpu.core_type<tc>, window_params = [{transform_indices = @transform_0, window_bounds = array<i64: 48, 64>}, {pipeline_mode = #tpu.pipeline_mode<synchronous>, transform_indices = @transform_1, window_bounds = array<i64: 64, 128>}, {pipeline_mode = #tpu.pipeline_mode<synchronous>, transform_indices = @transform_2, window_bounds = array<i64: 3, 128, 128>}, {pipeline_mode = #tpu.pipeline_mode<synchronous>, transform_indices = @transform_3, window_bounds = array<i64: 3, 128, 128>}, {pipeline_mode = #tpu.pipeline_mode<synchronous>, transform_indices = @transform_4, window_bounds = array<i64: 3, 128>}, {pipeline_mode = #tpu.pipeline_mode<synchronous>, transform_indices = @transform_5, window_bounds = array<i64: 48, 1>}, {transform_indices = @transform_6, window_bounds = array<i64: 48, 128>}]} {
    %c0 = arith.constant 0 : index
    %c0_0 = arith.constant 0 : index
    %0 = vector.load %arg6[%c0, %c0_0] : memref<48x1xf32, #tpu.memory_space<vmem>>, vector<48x1xf32>
    %c0_1 = arith.constant 0 : index
    %c0_2 = arith.constant 0 : index
    %1 = vector.load %arg1[%c0_1, %c0_2] : memref<48x64xf32, #tpu.memory_space<vmem>>, vector<48x64xf32>
    %2 = arith.truncf %1 : vector<48x64xf32> to vector<48x64xbf16>
    %c0_3 = arith.constant 0 : index
    %c0_4 = arith.constant 0 : index
    %3 = vector.load %arg2[%c0_3, %c0_4] : memref<64x128xbf16, #tpu.memory_space<vmem>>, vector<64x128xbf16>
    %cst = arith.constant dense<0.000000e+00> : vector<48x128xf32>
    %4 = tpu.matmul %2, %3, %cst {dimension_numbers = #tpu.dot_dimension_numbers<[1], [0], [0], [1], [0, 0, 1, 1], [], []>} : vector<48x64xbf16>, vector<64x128xbf16>, vector<48x128xf32> -> vector<48x128xf32>
    %c0_5 = arith.constant 0 : index
    %c0_6 = arith.constant 0 : index
    %5 = vector.load %arg5[%c0_5, %c0_6] : memref<3x128xf32, #tpu.memory_space<vmem>>, vector<1x128xf32>
    %6 = vector.broadcast %5 : vector<1x128xf32> to vector<48x128xf32>
    %7 = arith.addf %4, %6 : vector<48x128xf32>
    %cst_7 = arith.constant 0.000000e+00 : f32
    %8 = vector.broadcast %cst_7 : f32 to vector<48x128xf32>
    %9 = arith.maximumf %7, %8 : vector<48x128xf32>
    %10 = vector.broadcast %0 : vector<48x1xf32> to vector<48x128xf32>
    %11 = arith.mulf %9, %10 : vector<48x128xf32>
    %c0_8 = arith.constant 0 : index
    %c0_9 = arith.constant 0 : index
    %12 = vector.load %arg8[%c0_8, %c0_9] : memref<48x128xf32, #tpu.memory_space<vmem>>, vector<48x128xf32>
    tpu.vector_store %arg8[%c0_8, %c0_9], %11 {strides = array<i32>} : memref<48x128xf32, #tpu.memory_space<vmem>>, vector<48x128xf32>,
    %cst_10 = arith.constant 0.000000e+00 : f32
    %13 = vector.broadcast %cst_10 : f32 to vector<46x128xf32>
    %c0_11 = arith.constant 0 : index
    %c0_12 = arith.constant 0 : index
    %14 = vector.load %arg8[%c0_11, %c0_12] : memref<48x128xf32, #tpu.memory_space<vmem>>, vector<46x128xf32>
    %15 = arith.truncf %14 : vector<46x128xf32> to vector<46x128xbf16>
    %c0_13 = arith.constant 0 : index
    %c0_14 = arith.constant 0 : index
    %c0_15 = arith.constant 0 : index
    %16 = vector.load %arg3[%c0_13, %c0_14, %c0_15] : memref<3x128x128xbf16, #tpu.memory_space<vmem>>, vector<1x128x128xbf16>
    %17 = vector.shape_cast %16 : vector<1x128x128xbf16> to vector<128x128xbf16>
    %cst_16 = arith.constant dense<0.000000e+00> : vector<46x128xf32>
    %18 = tpu.matmul %15, %17, %cst_16 {dimension_numbers = #tpu.dot_dimension_numbers<[1], [0], [0], [1], [0, 0, 1, 1], [], []>} : vector<46x128xbf16>, vector<128x128xbf16>, vector<46x128xf32> -> vector<46x128xf32>
    %19 = arith.addf %13, %18 : vector<46x128xf32>
    %c1 = arith.constant 1 : index
    %c0_17 = arith.constant 0 : index
    %20 = vector.load %arg8[%c1, %c0_17] : memref<48x128xf32, #tpu.memory_space<vmem>>, vector<46x128xf32>
    %21 = arith.truncf %20 : vector<46x128xf32> to vector<46x128xbf16>
    %c1_18 = arith.constant 1 : index
    %c0_19 = arith.constant 0 : index
    %c0_20 = arith.constant 0 : index
    %22 = vector.load %arg3[%c1_18, %c0_19, %c0_20] : memref<3x128x128xbf16, #tpu.memory_space<vmem>>, vector<1x128x128xbf16>
    %23 = vector.shape_cast %22 : vector<1x128x128xbf16> to vector<128x128xbf16>
    %cst_21 = arith.constant dense<0.000000e+00> : vector<46x128xf32>
    %24 = tpu.matmul %21, %23, %cst_21 {dimension_numbers = #tpu.dot_dimension_numbers<[1], [0], [0], [1], [0, 0, 1, 1], [], []>} : vector<46x128xbf16>, vector<128x128xbf16>, vector<46x128xf32> -> vector<46x128xf32>
    %25 = arith.addf %19, %24 : vector<46x128xf32>
    %c2 = arith.constant 2 : index
    %c0_22 = arith.constant 0 : index
    %26 = vector.load %arg8[%c2, %c0_22] : memref<48x128xf32, #tpu.memory_space<vmem>>, vector<46x128xf32>
    %27 = arith.truncf %26 : vector<46x128xf32> to vector<46x128xbf16>
    %c2_23 = arith.constant 2 : index
    %c0_24 = arith.constant 0 : index
    %c0_25 = arith.constant 0 : index
    %28 = vector.load %arg3[%c2_23, %c0_24, %c0_25] : memref<3x128x128xbf16, #tpu.memory_space<vmem>>, vector<1x128x128xbf16>
    %29 = vector.shape_cast %28 : vector<1x128x128xbf16> to vector<128x128xbf16>
    %cst_26 = arith.constant dense<0.000000e+00> : vector<46x128xf32>
    %30 = tpu.matmul %27, %29, %cst_26 {dimension_numbers = #tpu.dot_dimension_numbers<[1], [0], [0], [1], [0, 0, 1, 1], [], []>} : vector<46x128xbf16>, vector<128x128xbf16>, vector<46x128xf32> -> vector<46x128xf32>
    %31 = arith.addf %25, %30 : vector<46x128xf32>
    %c1_27 = arith.constant 1 : index
    %c0_28 = arith.constant 0 : index
    %32 = vector.load %arg5[%c1_27, %c0_28] : memref<3x128xf32, #tpu.memory_space<vmem>>, vector<1x128xf32>
    %33 = vector.broadcast %32 : vector<1x128xf32> to vector<46x128xf32>
    %34 = arith.addf %31, %33 : vector<46x128xf32>
    %cst_29 = arith.constant 0.000000e+00 : f32
    %35 = vector.broadcast %cst_29 : f32 to vector<46x128xf32>
    %36 = arith.maximumf %34, %35 : vector<46x128xf32>
    %37 = vector.extract_strided_slice %11 {offsets = [1, 0], sizes = [46, 128], strides = [1, 1]} : vector<48x128xf32> to vector<46x128xf32>
    %38 = arith.addf %37, %36 : vector<46x128xf32>
    %39 = vector.extract_strided_slice %0 {offsets = [1, 0], sizes = [46, 1], strides = [1, 1]} : vector<48x1xf32> to vector<46x1xf32>
    %40 = vector.broadcast %39 : vector<46x1xf32> to vector<46x128xf32>
    %41 = arith.mulf %38, %40 : vector<46x128xf32>
    %c1_30 = arith.constant 1 : index
    %c0_31 = arith.constant 0 : index
    %42 = vector.load %arg8[%c1_30, %c0_31] : memref<48x128xf32, #tpu.memory_space<vmem>>, vector<46x128xf32>
    tpu.vector_store %arg8[%c1_30, %c0_31], %41 {strides = array<i32>} : memref<48x128xf32, #tpu.memory_space<vmem>>, vector<46x128xf32>,
    %cst_32 = arith.constant 0.000000e+00 : f32
    %43 = vector.broadcast %cst_32 : f32 to vector<46x128xf32>
    %c0_33 = arith.constant 0 : index
    %c0_34 = arith.constant 0 : index
    %44 = vector.load %arg8[%c0_33, %c0_34] : memref<48x128xf32, #tpu.memory_space<vmem>>, vector<46x128xf32>
    %45 = arith.truncf %44 : vector<46x128xf32> to vector<46x128xbf16>
    %c0_35 = arith.constant 0 : index
    %c0_36 = arith.constant 0 : index
    %c0_37 = arith.constant 0 : index
    %46 = vector.load %arg4[%c0_35, %c0_36, %c0_37] : memref<3x128x128xbf16, #tpu.memory_space<vmem>>, vector<1x128x128xbf16>
    %47 = vector.shape_cast %46 : vector<1x128x128xbf16> to vector<128x128xbf16>
    %cst_38 = arith.constant dense<0.000000e+00> : vector<46x128xf32>
    %48 = tpu.matmul %45, %47, %cst_38 {dimension_numbers = #tpu.dot_dimension_numbers<[1], [0], [0], [1], [0, 0, 1, 1], [], []>} : vector<46x128xbf16>, vector<128x128xbf16>, vector<46x128xf32> -> vector<46x128xf32>
    %49 = arith.addf %43, %48 : vector<46x128xf32>
    %c1_39 = arith.constant 1 : index
    %c0_40 = arith.constant 0 : index
    %50 = vector.load %arg8[%c1_39, %c0_40] : memref<48x128xf32, #tpu.memory_space<vmem>>, vector<46x128xf32>
    %51 = arith.truncf %50 : vector<46x128xf32> to vector<46x128xbf16>
    %c1_41 = arith.constant 1 : index
    %c0_42 = arith.constant 0 : index
    %c0_43 = arith.constant 0 : index
    %52 = vector.load %arg4[%c1_41, %c0_42, %c0_43] : memref<3x128x128xbf16, #tpu.memory_space<vmem>>, vector<1x128x128xbf16>
    %53 = vector.shape_cast %52 : vector<1x128x128xbf16> to vector<128x128xbf16>
    %cst_44 = arith.constant dense<0.000000e+00> : vector<46x128xf32>
    %54 = tpu.matmul %51, %53, %cst_44 {dimension_numbers = #tpu.dot_dimension_numbers<[1], [0], [0], [1], [0, 0, 1, 1], [], []>} : vector<46x128xbf16>, vector<128x128xbf16>, vector<46x128xf32> -> vector<46x128xf32>
    %55 = arith.addf %49, %54 : vector<46x128xf32>
    %c2_45 = arith.constant 2 : index
    %c0_46 = arith.constant 0 : index
    %56 = vector.load %arg8[%c2_45, %c0_46] : memref<48x128xf32, #tpu.memory_space<vmem>>, vector<46x128xf32>
    %57 = arith.truncf %56 : vector<46x128xf32> to vector<46x128xbf16>
    %c2_47 = arith.constant 2 : index
    %c0_48 = arith.constant 0 : index
    %c0_49 = arith.constant 0 : index
    %58 = vector.load %arg4[%c2_47, %c0_48, %c0_49] : memref<3x128x128xbf16, #tpu.memory_space<vmem>>, vector<1x128x128xbf16>
    %59 = vector.shape_cast %58 : vector<1x128x128xbf16> to vector<128x128xbf16>
    %cst_50 = arith.constant dense<0.000000e+00> : vector<46x128xf32>
    %60 = tpu.matmul %57, %59, %cst_50 {dimension_numbers = #tpu.dot_dimension_numbers<[1], [0], [0], [1], [0, 0, 1, 1], [], []>} : vector<46x128xbf16>, vector<128x128xbf16>, vector<46x128xf32> -> vector<46x128xf32>
    %61 = arith.addf %55, %60 : vector<46x128xf32>
    %c2_51 = arith.constant 2 : index
    %c0_52 = arith.constant 0 : index
    %62 = vector.load %arg5[%c2_51, %c0_52] : memref<3x128xf32, #tpu.memory_space<vmem>>, vector<1x128xf32>
    %63 = vector.broadcast %62 : vector<1x128xf32> to vector<46x128xf32>
    %64 = arith.addf %61, %63 : vector<46x128xf32>
    %cst_53 = arith.constant 0.000000e+00 : f32
    %65 = vector.broadcast %cst_53 : f32 to vector<46x128xf32>
    %66 = arith.maximumf %64, %65 : vector<46x128xf32>
    %c0_54 = arith.constant 0 : index
    %c0_55 = arith.constant 0 : index
    %67 = vector.load %arg7[%c0_54, %c0_55] : memref<48x128xf32, #tpu.memory_space<vmem>>, vector<46x128xf32>
    tpu.vector_store %arg7[%c0_54, %c0_55], %66 {strides = array<i32>} : memref<48x128xf32, #tpu.memory_space<vmem>>, vector<46x128xf32>,
    return
  }
  func.func @transform_0(%arg0: i32) -> (i32, i32) {
    %c0_i32 = arith.constant 0 : i32
    %c0_i32_0 = arith.constant 0 : i32
    return %arg0, %c0_i32 : i32, i32
  }
  func.func @transform_1(%arg0: i32) -> (i32, i32) {
    %c0_i32 = arith.constant 0 : i32
    %c0_i32_0 = arith.constant 0 : i32
    %c0_i32_1 = arith.constant 0 : i32
    return %c0_i32, %c0_i32_0 : i32, i32
  }
  func.func @transform_2(%arg0: i32) -> (i32, i32, i32) {
    %c0_i32 = arith.constant 0 : i32
    %c0_i32_0 = arith.constant 0 : i32
    %c0_i32_1 = arith.constant 0 : i32
    %c0_i32_2 = arith.constant 0 : i32
    return %c0_i32, %c0_i32_0, %c0_i32_1 : i32, i32, i32
  }
  func.func @transform_3(%arg0: i32) -> (i32, i32, i32) {
    %c0_i32 = arith.constant 0 : i32
    %c0_i32_0 = arith.constant 0 : i32
    %c0_i32_1 = arith.constant 0 : i32
    %c0_i32_2 = arith.constant 0 : i32
    return %c0_i32, %c0_i32_0, %c0_i32_1 : i32, i32, i32
  }
  func.func @transform_4(%arg0: i32) -> (i32, i32) {
    %c0_i32 = arith.constant 0 : i32
    %c0_i32_0 = arith.constant 0 : i32
    %c0_i32_1 = arith.constant 0 : i32
    return %c0_i32, %c0_i32_0 : i32, i32
  }
  func.func @transform_5(%arg0: i32) -> (i32, i32) {
    %c0_i32 = arith.constant 0 : i32
    %c0_i32_0 = arith.constant 0 : i32
    %c0_i32_1 = arith.constant 0 : i32
    return %c0_i32, %c0_i32_0 : i32, i32
  }
  func.func @transform_6(%arg0: i32) -> (i32, i32) {
    %c0_i32 = arith.constant 0 : i32
    %c0_i32_0 = arith.constant 0 : i32
    return %arg0, %c0_i32 : i32, i32
  }
}

</mosaic_0001>

<llo_original>
// kernel: tile.41
$region0: #{tile.41}
  #allocation0 [shape = 's32[1]{0}', space=sflag, size = 0x4, scoped, tag = 'scoped memory for tile.41']
  %s0 = inlined_call_operand.vmem [shape: f32[8], index: 0, kind: input, shape index: {}]
  %s1 = inlined_call_operand.vmem [shape: f32[16,8], index: 1, kind: output, shape index: {}]
  // Predicated region
  $region2: #{tile.41} parent=0 // pred_check
    _
  $region3: #{tile.41} parent=0 // pred_check_branch
    %3 = sbr.rel (0) target = $region5
  $region4: #{tile.41} parent=0 // pred_region
    _
  $region5: #{tile.41} parent=0 // pred_fallthru
    _
  %v4 = vld [vmem:[%s0] ss:$0 sm:$0xff]
  %5 = vst [vmem:[%s1] sm:$0xff] %v4
  %s6 = scalar_lea.vmem %s1, 8
  %7 = vst [vmem:[%s6] sm:$0xff] %v4

// kernel: mul.24
$region0: #{mul.24}
  %s0 = inlined_call_operand.vmem [shape: f32[16,8], index: 0, kind: input, shape index: {}]
  %s1 = inlined_call_operand.vmem [shape: f32[128], index: 1, kind: output, shape index: {}]
  $region1: #{mul.24} parent=0
    #allocation0 [shape = 'u8[4096]{0}', space=vmem, size = 0x1000, scoped, tag = 'scoped mem for output reshape']
    %v2 = vld [vmem:[%s0] sm:$0x1]
    %vm3 = vcmask 64512
    %4 = vst.msk [vmem:[#allocation0] sm:$0x1] %vm3, %v2
    %s5 = scalar_lea.vmem %s0, 15
    %v6 = vld [vmem:[%s5] sm:$0x1]
    %7 = vrot.lane.b32.xlu0 %v6, 120
    %v8 = vpop.permute.xlu0 %7
    %vm9 = vcmask 1048512
    %10 = vst.msk [vmem:[#allocation0] sm:$0x1] %vm9, %v8
    %s11 = scalar_lea.vmem %s0, 14
    %v12 = vld [vmem:[%s11] sm:$0x1]
    %13 = vrot.lane.b32.xlu0 %v12, 112
    %v14 = vpop.permute.xlu0 %13
    %vm15 = vcmask 982912
    %16 = vst.msk [vmem:[#allocation0] sm:$0x1] %vm15, %v14
    %s17 = scalar_lea.vmem %s0, 13
    %v18 = vld [vmem:[%s17] sm:$0x1]
    %19 = vrot.lane.b32.xlu0 %v18, 104
    %v20 = vpop.permute.xlu0 %19
    %vm21 = vcmask 917312
    %22 = vst.msk [vmem:[#allocation0] sm:$0x1] %vm21, %v20
    %s23 = scalar_lea.vmem %s0, 12
    %v24 = vld [vmem:[%s23] sm:$0x1]
    %25 = vrot.lane.b32.xlu0 %v24, 96
    %v26 = vpop.permute.xlu0 %25
    %vm27 = vcmask 851712
    %28 = vst.msk [vmem:[#allocation0] sm:$0x1] %vm27, %v26
    %s29 = scalar_lea.vmem %s0, 11
    %v30 = vld [vmem:[%s29] sm:$0x1]
    %31 = vrot.lane.b32.xlu0 %v30, 88
    %v32 = vpop.permute.xlu0 %31
    %vm33 = vcmask 786112
    %34 = vst.msk [vmem:[#allocation0] sm:$0x1] %vm33, %v32
    %s35 = scalar_lea.vmem %s0, 10
    %v36 = vld [vmem:[%s35] sm:$0x1]
    %37 = vrot.lane.b32.xlu0 %v36, 80
    %v38 = vpop.permute.xlu0 %37
    %vm39 = vcmask 720512
    %40 = vst.msk [vmem:[#allocation0] sm:$0x1] %vm39, %v38
    %s41 = scalar_lea.vmem %s0, 9
    %v42 = vld [vmem:[%s41] sm:$0x1]
    %43 = vrot.lane.b32.xlu0 %v42, 72
    %v44 = vpop.permute.xlu0 %43
    %vm45 = vcmask 654912
    %46 = vst.msk [vmem:[#allocation0] sm:$0x1] %vm45, %v44
    %s47 = scalar_lea.vmem %s0, 8
    %v48 = vld [vmem:[%s47] sm:$0x1]
    %49 = vrot.lane.b32.xlu0 %v48, 64
    %v50 = vpop.permute.xlu0 %49
    %vm51 = vcmask 589312
    %52 = vst.msk [vmem:[#allocation0] sm:$0x1] %vm51, %v50
    %s53 = scalar_lea.vmem %s0, 7
    %v54 = vld [vmem:[%s53] sm:$0x1]
    %55 = vrot.lane.b32.xlu0 %v54, 56
    %v56 = vpop.permute.xlu0 %55
    %vm57 = vcmask 523712
    %58 = vst.msk [vmem:[#allocation0] sm:$0x1] %vm57, %v56
    %s59 = scalar_lea.vmem %s0, 6
    %v60 = vld [vmem:[%s59] sm:$0x1]
    %61 = vrot.lane.b32.xlu0 %v60, 48
    %v62 = vpop.permute.xlu0 %61
    %vm63 = vcmask 458112
    %64 = vst.msk [vmem:[#allocation0] sm:$0x1] %vm63, %v62
    %s65 = scalar_lea.vmem %s0, 5
    %v66 = vld [vmem:[%s65] sm:$0x1]
    %67 = vrot.lane.b32.xlu0 %v66, 40
    %v68 = vpop.permute.xlu0 %67
    %vm69 = vcmask 392512
    %70 = vst.msk [vmem:[#allocation0] sm:$0x1] %vm69, %v68
    %s71 = scalar_lea.vmem %s0, 4
    %v72 = vld [vmem:[%s71] sm:$0x1]
    %73 = vrot.lane.b32.xlu0 %v72, 32
    %v74 = vpop.permute.xlu0 %73
    %vm75 = vcmask 326912
    %76 = vst.msk [vmem:[#allocation0] sm:$0x1] %vm75, %v74
    %s77 = scalar_lea.vmem %s0, 3
    %v78 = vld [vmem:[%s77] sm:$0x1]
    %79 = vrot.lane.b32.xlu0 %v78, 24
    %v80 = vpop.permute.xlu0 %79
    %vm81 = vcmask 261312
    %82 = vst.msk [vmem:[#allocation0] sm:$0x1] %vm81, %v80
    %s83 = scalar_lea.vmem %s0, 2
    %v84 = vld [vmem:[%s83] sm:$0x1]
    %85 = vrot.lane.b32.xlu0 %v84, 16
    %v86 = vpop.permute.xlu0 %85
    %vm87 = vcmask 195712
    %88 = vst.msk [vmem:[#allocation0] sm:$0x1] %vm87, %v86
    %s89 = scalar_lea.vmem %s0, 1
    %v90 = vld [vmem:[%s89] sm:$0x1]
    %91 = vrot.lane.b32.xlu0 %v90, 8
    %v92 = vpop.permute.xlu0 %91
    %vm93 = vcmask 130112
    %94 = vst.msk [vmem:[#allocation0] sm:$0x1] %vm93, %v92
    %s96 = sshllo.u32 0, 1
    %v98 = vld [vmem:[#allocation0] sm:%s96]
    %s99 = sshllo.u32 0, 1
    %100 = vst [vmem:[%s1] sm:%s99] %v98

// kernel: tile.57
$region0: #{tile.57}
  %s0 = inlined_call_operand.vmem [shape: f32[16,8], index: 0, kind: input, shape index: {}]
  %s1 = inlined_call_operand.vmem [shape: f32[1,128], index: 1, kind: output, shape index: {}]
  $region1: #{tile.57} parent=0
    #allocation0 [shape = 'u8[4096]{0}', space=vmem, size = 0x1000, scoped, tag = 'scoped mem for output reshape']
    %v2 = vld [vmem:[%s0] sm:$0x1]
    %vm3 = vcmask 64512
    %4 = vst.msk [vmem:[#allocation0] sm:$0x1] %vm3, %v2
    %s5 = scalar_lea.vmem %s0, 15
    %v6 = vld [vmem:[%s5] sm:$0x1]
    %7 = vrot.lane.b32.xlu0 %v6, 120
    %v8 = vpop.permute.xlu0 %7
    %vm9 = vcmask 1048512
    %10 = vst.msk [vmem:[#allocation0] sm:$0x1] %vm9, %v8
    %s11 = scalar_lea.vmem %s0, 14
    %v12 = vld [vmem:[%s11] sm:$0x1]
    %13 = vrot.lane.b32.xlu0 %v12, 112
    %v14 = vpop.permute.xlu0 %13
    %vm15 = vcmask 982912
    %16 = vst.msk [vmem:[#allocation0] sm:$0x1] %vm15, %v14
    %s17 = scalar_lea.vmem %s0, 13
    %v18 = vld [vmem:[%s17] sm:$0x1]
    %19 = vrot.lane.b32.xlu0 %v18, 104
    %v20 = vpop.permute.xlu0 %19
    %vm21 = vcmask 917312
    %22 = vst.msk [vmem:[#allocation0] sm:$0x1] %vm21, %v20
    %s23 = scalar_lea.vmem %s0, 12
    %v24 = vld [vmem:[%s23] sm:$0x1]
    %25 = vrot.lane.b32.xlu0 %v24, 96
    %v26 = vpop.permute.xlu0 %25
    %vm27 = vcmask 851712
    %28 = vst.msk [vmem:[#allocation0] sm:$0x1] %vm27, %v26
    %s29 = scalar_lea.vmem %s0, 11
    %v30 = vld [vmem:[%s29] sm:$0x1]
    %31 = vrot.lane.b32.xlu0 %v30, 88
    %v32 = vpop.permute.xlu0 %31
    %vm33 = vcmask 786112
    %34 = vst.msk [vmem:[#allocation0] sm:$0x1] %vm33, %v32
    %s35 = scalar_lea.vmem %s0, 10
    %v36 = vld [vmem:[%s35] sm:$0x1]
    %37 = vrot.lane.b32.xlu0 %v36, 80
    %v38 = vpop.permute.xlu0 %37
    %vm39 = vcmask 720512
    %40 = vst.msk [vmem:[#allocation0] sm:$0x1] %vm39, %v38
    %s41 = scalar_lea.vmem %s0, 9
    %v42 = vld [vmem:[%s41] sm:$0x1]
    %43 = vrot.lane.b32.xlu0 %v42, 72
    %v44 = vpop.permute.xlu0 %43
    %vm45 = vcmask 654912
    %46 = vst.msk [vmem:[#allocation0] sm:$0x1] %vm45, %v44
    %s47 = scalar_lea.vmem %s0, 8
    %v48 = vld [vmem:[%s47] sm:$0x1]
    %49 = vrot.lane.b32.xlu0 %v48, 64
    %v50 = vpop.permute.xlu0 %49
    %vm51 = vcmask 589312
    %52 = vst.msk [vmem:[#allocation0] sm:$0x1] %vm51, %v50
    %s53 = scalar_lea.vmem %s0, 7
    %v54 = vld [vmem:[%s53] sm:$0x1]
    %55 = vrot.lane.b32.xlu0 %v54, 56
    %v56 = vpop.permute.xlu0 %55
    %vm57 = vcmask 523712
    %58 = vst.msk [vmem:[#allocation0] sm:$0x1] %vm57, %v56
    %s59 = scalar_lea.vmem %s0, 6
    %v60 = vld [vmem:[%s59] sm:$0x1]
    %61 = vrot.lane.b32.xlu0 %v60, 48
    %v62 = vpop.permute.xlu0 %61
    %vm63 = vcmask 458112
    %64 = vst.msk [vmem:[#allocation0] sm:$0x1] %vm63, %v62
    %s65 = scalar_lea.vmem %s0, 5
    %v66 = vld [vmem:[%s65] sm:$0x1]
    %67 = vrot.lane.b32.xlu0 %v66, 40
    %v68 = vpop.permute.xlu0 %67
    %vm69 = vcmask 392512
    %70 = vst.msk [vmem:[#allocation0] sm:$0x1] %vm69, %v68
    %s71 = scalar_lea.vmem %s0, 4
    %v72 = vld [vmem:[%s71] sm:$0x1]
    %73 = vrot.lane.b32.xlu0 %v72, 32
    %v74 = vpop.permute.xlu0 %73
    %vm75 = vcmask 326912
    %76 = vst.msk [vmem:[#allocation0] sm:$0x1] %vm75, %v74
    %s77 = scalar_lea.vmem %s0, 3
    %v78 = vld [vmem:[%s77] sm:$0x1]
    %79 = vrot.lane.b32.xlu0 %v78, 24
    %v80 = vpop.permute.xlu0 %79
    %vm81 = vcmask 261312
    %82 = vst.msk [vmem:[#allocation0] sm:$0x1] %vm81, %v80
    %s83 = scalar_lea.vmem %s0, 2
    %v84 = vld [vmem:[%s83] sm:$0x1]
    %85 = vrot.lane.b32.xlu0 %v84, 16
    %v86 = vpop.permute.xlu0 %85
    %vm87 = vcmask 195712
    %88 = vst.msk [vmem:[#allocation0] sm:$0x1] %vm87, %v86
    %s89 = scalar_lea.vmem %s0, 1
    %v90 = vld [vmem:[%s89] sm:$0x1]
    %91 = vrot.lane.b32.xlu0 %v90, 8
    %v92 = vpop.permute.xlu0 %91
    %vm93 = vcmask 130112
    %94 = vst.msk [vmem:[#allocation0] sm:$0x1] %vm93, %v92
    %s96 = sshllo.u32 0, 1
    %v98 = vld [vmem:[#allocation0] sm:%s96]
    %s99 = sshllo.u32 0, 1
    %100 = vst [vmem:[%s1] sm:%s99] %v98

// kernel: sq_out_forward.1
$region0: #{sq_out_forward.1}
  #allocation0 [shape = 'u32[]', space=smem, size = 0x4, offset = 0x4, fixed_abs, tag = 'smem constant byte address 0x4 - core index']
  #allocation1 [shape = 'u32[144,128]{1,0:T(1,128)}', space=vmem, size = 0x12000, scoped, tag = 'internal scratch']
  #allocation2 [shape = 'f32[48,128]{1,0:T(8,128)}', space=vmem, size = 0x6000, scoped, tag = 'scratch operand']
  %s0 = inlined_call_operand.vmem [shape: f32[48,64], index: 0, kind: input, shape index: {}]
  %s1 = inlined_call_operand.vmem [shape: bf16[64,128], index: 1, kind: input, shape index: {}]
  %s2 = inlined_call_operand.vmem [shape: bf16[3,128,128], index: 2, kind: input, shape index: {}]
  %s3 = inlined_call_operand.vmem [shape: bf16[3,128,128], index: 3, kind: input, shape index: {}]
  %s4 = inlined_call_operand.vmem [shape: f32[3,128], index: 4, kind: input, shape index: {}]
  %s5 = inlined_call_operand.vmem [shape: f32[48,1], index: 5, kind: input, shape index: {}]
  %s6 = inlined_call_operand.vmem [shape: f32[48,128], index: 6, kind: output, shape index: {}]
  %s7 = sld [smem:[#allocation0]]
  $region34: #{sq_out_forward.1} parent=0
    _
  %s9 = ssub.s32 1, %s7
  %s10 = scalar_select 0, %s9, %s7
  // Predicated region
  $region2: #{sq_out_forward.1} parent=0 // pred_check
    _
  $region3: #{sq_out_forward.1} parent=0 // pred_check_branch
    %12 = sbr.rel (0) target = $region5
  $region4: #{sq_out_forward.1} parent=0 // pred_region
    _
  $region5: #{sq_out_forward.1} parent=0 // pred_fallthru
    _
  // Predicated region
  $region6: #{sq_out_forward.1} parent=0 // pred_check
    _
  $region7: #{sq_out_forward.1} parent=0 // pred_check_branch
    %14 = sbr.rel (0) target = $region9
  $region8: #{sq_out_forward.1} parent=0 // pred_region
    _
  $region9: #{sq_out_forward.1} parent=0 // pred_fallthru
    _
  // Predicated region
  $region10: #{sq_out_forward.1} parent=0 // pred_check
    _
  $region11: #{sq_out_forward.1} parent=0 // pred_check_branch
    %16 = sbr.rel (0) target = $region13
  $region12: #{sq_out_forward.1} parent=0 // pred_region
    _
  $region13: #{sq_out_forward.1} parent=0 // pred_fallthru
    _
  // Predicated region
  $region14: #{sq_out_forward.1} parent=0 // pred_check
    _
  $region15: #{sq_out_forward.1} parent=0 // pred_check_branch
    %18 = sbr.rel (0) target = $region17
  $region16: #{sq_out_forward.1} parent=0 // pred_region
    _
  $region17: #{sq_out_forward.1} parent=0 // pred_fallthru
    _
  // Predicated region
  $region18: #{sq_out_forward.1} parent=0 // pred_check
    _
  $region19: #{sq_out_forward.1} parent=0 // pred_check_branch
    %20 = sbr.rel (0) target = $region21
  $region20: #{sq_out_forward.1} parent=0 // pred_region
    _
  $region21: #{sq_out_forward.1} parent=0 // pred_fallthru
    _
  // Predicated region
  $region22: #{sq_out_forward.1} parent=0 // pred_check
    _
  $region23: #{sq_out_forward.1} parent=0 // pred_check_branch
    %22 = sbr.rel (0) target = $region25
  $region24: #{sq_out_forward.1} parent=0 // pred_region
    _
  $region25: #{sq_out_forward.1} parent=0 // pred_fallthru
    _
  %v24 = vld [vmem:[%s5] sm:$0xff]
  %v25 = vld [vmem:[%s5 + $0x8] sm:$0xff]
  %v26 = vld [vmem:[%s5 + $0x10] sm:$0xff]
  %v27 = vld [vmem:[%s5 + $0x18] sm:$0xff]
  %v28 = vld [vmem:[%s5 + $0x20] sm:$0xff]
  %v29 = vld [vmem:[%s5 + $0x28] sm:$0xff]
  %v30 = vld [vmem:[%s0] sm:$0xff]
  %v31 = vld [vmem:[%s0 + $0x8] sm:$0xff]
  %v32 = vld [vmem:[%s0 + $0x10] sm:$0xff]
  %v33 = vld [vmem:[%s0 + $0x18] sm:$0xff]
  %v34 = vld [vmem:[%s0 + $0x20] sm:$0xff]
  %v35 = vld [vmem:[%s0 + $0x28] sm:$0xff]
  %v36 = vpack.c.bf16 %v31, %v30
  %v37 = vpack.c.bf16 %v33, %v32
  %v38 = vpack.c.bf16 %v35, %v34
  %v39 = vld [vmem:[%s1] sm:$0xf]
  %v40 = vld [vmem:[%s1 + $0x4] sm:$0xf]
  %v41 = vld [vmem:[%s1 + $0x8] sm:$0xf]
  %v42 = vld [vmem:[%s1 + $0xc] sm:$0xf]
  %v43 = vld [vmem:[%s1 + $0x10] sm:$0xf]
  %v44 = vld [vmem:[%s1 + $0x14] sm:$0xf]
  %v45 = vld [vmem:[%s1 + $0x18] sm:$0xf]
  %v46 = vld [vmem:[%s1 + $0x1c] sm:$0xf]
  %v47 = vld [vmem:[%s4] sm:$0x1]
  %v48 = vlaneseq
  %v49 = vshrl.u32 %v48, 7
  %v50 = vsub.s32 0, %v49
  %v51 = vrot.slane %v47, %v50
  %v60 = vunpack.c.l.b16 %v39
  %v61 = vunpack.c.l.b16 %v40
  %v62 = vunpack.c.l.b16 %v41
  %v63 = vunpack.c.l.b16 %v42
  %v64 = vunpack.c.l.b16 %v43
  %v65 = vunpack.c.l.b16 %v44
  %v66 = vunpack.c.l.b16 %v45
  %v67 = vunpack.c.l.b16 %v46
  %v68 = vpack.c.b16 %v61, %v60
  %v69 = vpack.c.b16 %v63, %v62
  %v70 = vpack.c.b16 %v65, %v64
  %v71 = vpack.c.b16 %v67, %v66
  %vm76 = vcmask 523264
  %v78 = vsel %vm76, %v36, 0
  %v81 = vsel %vm76, %v37, 0
  %v84 = vsel %vm76, %v38, 0
  %86 = vmatprep.subr.bf16.mxu0 0
  %87 = vmatpush1.bf16.msra.mxu0 %v68
  %88 = vmatprep.subr.bf16.mxu0 0
  %89 = vmatpush1.bf16.msra.mxu0 %v69
  %90 = vmatprep.subr.bf16.mxu0 0
  %91 = vmatpush1.bf16.msra.mxu0 %v70
  %92 = vmatprep.subr.bf16.mxu0 0
  %93 = vmatpush1.bf16.msra.mxu0 %v71
  %94 = vmatprep.subr.bf16.mxu0 0
  %95 = vmatpush1.bf16.msra.mxu0 0
  %96 = vmatprep.subr.bf16.mxu0 0
  %97 = vmatpush1.bf16.msra.mxu0 0
  %98 = vmatprep.subr.bf16.mxu0 0
  %99 = vmatpush1.bf16.msra.mxu0 0
  %100 = vmatprep.subr.bf16.mxu0 0
  %101 = vmatpush1.bf16.msra.mxu0 0
  %102 = vmatprep.subr.bf16.mxu0 0
  %103 = vmatpush1.bf16.msra.mxu0 0
  %104 = vmatprep.subr.bf16.mxu0 0
  %105 = vmatpush1.bf16.msra.mxu0 0
  %106 = vmatprep.subr.bf16.mxu0 0
  %107 = vmatpush1.bf16.msra.mxu0 0
  %108 = vmatprep.subr.bf16.mxu0 0
  %109 = vmatpush1.bf16.msra.mxu0 0
  %110 = vmatprep.subr.bf16.mxu0 0
  %111 = vmatpush1.bf16.msra.mxu0 0
  %112 = vmatprep.subr.bf16.mxu0 0
  %113 = vmatpush1.bf16.msra.mxu0 0
  %114 = vmatprep.subr.bf16.mxu0 0
  %115 = vmatpush1.bf16.msra.mxu0 0
  %116 = vmatprep.subr.bf16.mxu0 0
  %117 = vmatpush1.bf16.msra.mxu0 0
  %118 = vmatprep.mubr.bf16.mxu0 0
  %119 = vmatmul.mubr.bf16.gmra.mrb[0].mxu0 %v78
  %v120 = vpop.f32.mrb[0].mxu0
  %v121 = vadd.f32 %v51, %v120
  %v122 = vpop.f32.mrb[0].mxu0
  %v123 = vpop.f32.mrb[0].mxu0
  %v124 = vadd.f32 %v51, %v123
  %v125 = vpop.f32.mrb[0].mxu0
  %126 = vmatprep.mubr.bf16.mxu0 0
  %127 = vmatmul.mubr.bf16.gmra.mrb[0].mxu0 %v81
  %v128 = vpop.f32.mrb[0].mxu0
  %v129 = vadd.f32 %v51, %v128
  %v130 = vpop.f32.mrb[0].mxu0
  %v131 = vpop.f32.mrb[0].mxu0
  %v132 = vadd.f32 %v51, %v131
  %v133 = vpop.f32.mrb[0].mxu0
  %134 = vmatprep.mubr.bf16.mxu0 0
  %135 = vmatmul.mubr.bf16.gmra.mrb[0].mxu0 %v84
  %v136 = vpop.f32.mrb[0].mxu0
  %v137 = vadd.f32 %v51, %v136
  %v138 = vpop.f32.mrb[0].mxu0
  %v139 = vpop.f32.mrb[0].mxu0
  %v140 = vadd.f32 %v51, %v139
  %v141 = vpop.f32.mrb[0].mxu0
  %142 = vdwg.mxu0
  %v143 = vmax.f32 %v121, 0.0
  %v144 = vmax.f32 %v124, 0.0
  %v145 = vmax.f32 %v129, 0.0
  %v146 = vmax.f32 %v132, 0.0
  %v147 = vmax.f32 %v137, 0.0
  %v148 = vmax.f32 %v140, 0.0
  %150 = vset.pattern.permute.xlu0 0
  %151 = vperm.xlu0 %150, %v24
  %v152 = vpop.permute.xlu0 %151
  %155 = vset.pattern.permute.xlu0 0
  %156 = vperm.xlu0 %155, %v25
  %v157 = vpop.permute.xlu0 %156
  %160 = vset.pattern.permute.xlu0 0
  %161 = vperm.xlu0 %160, %v26
  %v162 = vpop.permute.xlu0 %161
  %165 = vset.pattern.permute.xlu0 0
  %166 = vperm.xlu0 %165, %v27
  %v167 = vpop.permute.xlu0 %166
  %170 = vset.pattern.permute.xlu0 0
  %171 = vperm.xlu0 %170, %v28
  %v172 = vpop.permute.xlu0 %171
  %175 = vset.pattern.permute.xlu0 0
  %176 = vperm.xlu0 %175, %v29
  %v177 = vpop.permute.xlu0 %176
  %v179 = vmul.f32 %v143, %v152
  %v180 = vmul.f32 %v144, %v157
  %v181 = vmul.f32 %v145, %v162
  %v182 = vmul.f32 %v146, %v167
  %v183 = vmul.f32 %v147, %v172
  %v184 = vmul.f32 %v148, %v177
  %185 = vst [vmem:[#allocation2] sm:$0xff] %v179
  %186 = vst [vmem:[#allocation2 + $0x8] sm:$0xff] %v180
  %187 = vst [vmem:[#allocation2 + $0x10] sm:$0xff] %v181
  %188 = vst [vmem:[#allocation2 + $0x18] sm:$0xff] %v182
  %189 = vst [vmem:[#allocation2 + $0x20] sm:$0xff] %v183
  %190 = vst [vmem:[#allocation2 + $0x28] sm:$0xff] %v184
  %v191 = vld [vmem:[#allocation2] sm:$0xff]
  %v192 = vld [vmem:[#allocation2 + $0x8] sm:$0xff]
  %v193 = vld [vmem:[#allocation2 + $0x10] sm:$0xff]
  %v194 = vld [vmem:[#allocation2 + $0x18] sm:$0xff]
  %v195 = vld [vmem:[#allocation2 + $0x20] sm:$0xff]
  %v196 = vld [vmem:[#allocation2 + $0x28] sm:$0x3f]
  %v197 = vpack.c.bf16 %v192, %v191
  %v198 = vpack.c.bf16 %v194, %v193
  %v199 = vpack.c.bf16 %v196, %v195
  %v200 = vld [vmem:[%s2] sm:$0xf]
  %v201 = vld [vmem:[%s2 + $0x4] sm:$0xf]
  %v202 = vld [vmem:[%s2 + $0x8] sm:$0xf]
  %v203 = vld [vmem:[%s2 + $0xc] sm:$0xf]
  %v204 = vld [vmem:[%s2 + $0x10] sm:$0xf]
  %v205 = vld [vmem:[%s2 + $0x14] sm:$0xf]
  %v206 = vld [vmem:[%s2 + $0x18] sm:$0xf]
  %v207 = vld [vmem:[%s2 + $0x1c] sm:$0xf]
  %v208 = vld [vmem:[%s2 + $0x20] sm:$0xf]
  %v209 = vld [vmem:[%s2 + $0x24] sm:$0xf]
  %v210 = vld [vmem:[%s2 + $0x28] sm:$0xf]
  %v211 = vld [vmem:[%s2 + $0x2c] sm:$0xf]
  %v212 = vld [vmem:[%s2 + $0x30] sm:$0xf]
  %v213 = vld [vmem:[%s2 + $0x34] sm:$0xf]
  %v214 = vld [vmem:[%s2 + $0x38] sm:$0xf]
  %v215 = vld [vmem:[%s2 + $0x3c] sm:$0xf]
  %v216 = vld [vmem:[#allocation2 + $0x1] sm:$0xff]
  %v217 = vld [vmem:[#allocation2 + $0x9] sm:$0xff]
  %v218 = vld [vmem:[#allocation2 + $0x11] sm:$0xff]
  %v219 = vld [vmem:[#allocation2 + $0x19] sm:$0xff]
  %v220 = vld [vmem:[#allocation2 + $0x21] sm:$0xff]
  %v221 = vld [vmem:[#allocation2 + $0x29] sm:$0x3f]
  %v222 = vpack.c.bf16 %v217, %v216
  %v223 = vpack.c.bf16 %v219, %v218
  %v224 = vpack.c.bf16 %v221, %v220
  %s225 = scalar_lea.vmem %s2, 64
  %v226 = vld [vmem:[%s225] sm:$0xf]
  %v227 = vld [vmem:[%s225 + $0x4] sm:$0xf]
  %v228 = vld [vmem:[%s225 + $0x8] sm:$0xf]
  %v229 = vld [vmem:[%s225 + $0xc] sm:$0xf]
  %v230 = vld [vmem:[%s225 + $0x10] sm:$0xf]
  %v231 = vld [vmem:[%s225 + $0x14] sm:$0xf]
  %v232 = vld [vmem:[%s225 + $0x18] sm:$0xf]
  %v233 = vld [vmem:[%s225 + $0x1c] sm:$0xf]
  %v234 = vld [vmem:[%s225 + $0x20] sm:$0xf]
  %v235 = vld [vmem:[%s225 + $0x24] sm:$0xf]
  %v236 = vld [vmem:[%s225 + $0x28] sm:$0xf]
  %v237 = vld [vmem:[%s225 + $0x2c] sm:$0xf]
  %v238 = vld [vmem:[%s225 + $0x30] sm:$0xf]
  %v239 = vld [vmem:[%s225 + $0x34] sm:$0xf]
  %v240 = vld [vmem:[%s225 + $0x38] sm:$0xf]
  %v241 = vld [vmem:[%s225 + $0x3c] sm:$0xf]
  %v258 = vunpack.c.l.b16 %v226
  %v259 = vunpack.c.l.b16 %v227
  %v260 = vunpack.c.l.b16 %v228
  %v261 = vunpack.c.l.b16 %v229
  %v262 = vunpack.c.l.b16 %v230
  %v263 = vunpack.c.l.b16 %v231
  %v264 = vunpack.c.l.b16 %v232
  %v265 = vunpack.c.l.b16 %v233
  %v266 = vunpack.c.l.b16 %v234
  %v267 = vunpack.c.l.b16 %v235
  %v268 = vunpack.c.l.b16 %v236
  %v269 = vunpack.c.l.b16 %v237
  %v270 = vunpack.c.l.b16 %v238
  %v271 = vunpack.c.l.b16 %v239
  %v272 = vunpack.c.l.b16 %v240
  %v273 = vunpack.c.l.b16 %v241
  %v274 = vpack.c.b16 %v259, %v258
  %v275 = vpack.c.b16 %v261, %v260
  %v276 = vpack.c.b16 %v263, %v262
  %v277 = vpack.c.b16 %v265, %v264
  %v278 = vpack.c.b16 %v267, %v266
  %v279 = vpack.c.b16 %v269, %v268
  %v280 = vpack.c.b16 %v271, %v270
  %v281 = vpack.c.b16 %v273, %v272
  %290 = vmatprep.subr.bf16.mxu0 0
  %291 = vmatpush1.bf16.msra.mxu0 %v274
  %292 = vmatprep.subr.bf16.mxu0 0
  %293 = vmatpush1.bf16.msra.mxu0 %v275
  %294 = vmatprep.subr.bf16.mxu0 0
  %295 = vmatpush1.bf16.msra.mxu0 %v276
  %296 = vmatprep.subr.bf16.mxu0 0
  %297 = vmatpush1.bf16.msra.mxu0 %v277
  %298 = vmatprep.subr.bf16.mxu0 0
  %299 = vmatpush1.bf16.msra.mxu0 %v278
  %300 = vmatprep.subr.bf16.mxu0 0
  %301 = vmatpush1.bf16.msra.mxu0 %v279
  %302 = vmatprep.subr.bf16.mxu0 0
  %303 = vmatpush1.bf16.msra.mxu0 %v280
  %304 = vmatprep.subr.bf16.mxu0 0
  %305 = vmatpush1.bf16.msra.mxu0 %v281
  %306 = vmatprep.subr.bf16.mxu0 0
  %307 = vmatpush1.bf16.msra.mxu0 0
  %308 = vmatprep.subr.bf16.mxu0 0
  %309 = vmatpush1.bf16.msra.mxu0 0
  %310 = vmatprep.subr.bf16.mxu0 0
  %311 = vmatpush1.bf16.msra.mxu0 0
  %312 = vmatprep.subr.bf16.mxu0 0
  %313 = vmatpush1.bf16.msra.mxu0 0
  %314 = vmatprep.subr.bf16.mxu0 0
  %315 = vmatpush1.bf16.msra.mxu0 0
  %316 = vmatprep.subr.bf16.mxu0 0
  %317 = vmatpush1.bf16.msra.mxu0 0
  %318 = vmatprep.subr.bf16.mxu0 0
  %319 = vmatpush1.bf16.msra.mxu0 0
  %320 = vmatprep.subr.bf16.mxu0 0
  %321 = vmatpush1.bf16.msra.mxu0 0
  %322 = vmatprep.mubr.bf16.mxu0 0
  %323 = vmatmul.mubr.bf16.gmra.mrb[0].mxu0 %v222
  %v324 = vpop.f32.mrb[0].mxu0
  %v325 = vadd.f32 0.0, %v324
  %v326 = vpop.f32.mrb[0].mxu0
  %v327 = vpop.f32.mrb[0].mxu0
  %v328 = vadd.f32 0.0, %v327
  %v329 = vpop.f32.mrb[0].mxu0
  %330 = vmatprep.mubr.bf16.mxu0 0
  %331 = vmatmul.mubr.bf16.gmra.mrb[0].mxu0 %v223
  %v332 = vpop.f32.mrb[0].mxu0
  %v333 = vadd.f32 0.0, %v332
  %v334 = vpop.f32.mrb[0].mxu0
  %v335 = vpop.f32.mrb[0].mxu0
  %v336 = vadd.f32 0.0, %v335
  %v337 = vpop.f32.mrb[0].mxu0
  %338 = vmatprep.mubr.bf16.mxu0 0
  %339 = vmatmul.mubr.bf16.gmra.mrb[0].mxu0 %v224
  %v340 = vpop.f32.mrb[0].mxu0
  %v341 = vadd.f32 0.0, %v340
  %v342 = vpop.f32.mrb[0].mxu0
  %v343 = vpop.f32.mrb[0].mxu0
  %v344 = vadd.f32 0.0, %v343
  %v345 = vpop.f32.mrb[0].mxu0
  %346 = vdwg.mxu0
  %v363 = vunpack.c.l.b16 %v200
  %v364 = vunpack.c.l.b16 %v201
  %v365 = vunpack.c.l.b16 %v202
  %v366 = vunpack.c.l.b16 %v203
  %v367 = vunpack.c.l.b16 %v204
  %v368 = vunpack.c.l.b16 %v205
  %v369 = vunpack.c.l.b16 %v206
  %v370 = vunpack.c.l.b16 %v207
  %v371 = vunpack.c.l.b16 %v208
  %v372 = vunpack.c.l.b16 %v209
  %v373 = vunpack.c.l.b16 %v210
  %v374 = vunpack.c.l.b16 %v211
  %v375 = vunpack.c.l.b16 %v212
  %v376 = vunpack.c.l.b16 %v213
  %v377 = vunpack.c.l.b16 %v214
  %v378 = vunpack.c.l.b16 %v215
  %v379 = vpack.c.b16 %v364, %v363
  %v380 = vpack.c.b16 %v366, %v365
  %v381 = vpack.c.b16 %v368, %v367
  %v382 = vpack.c.b16 %v370, %v369
  %v383 = vpack.c.b16 %v372, %v371
  %v384 = vpack.c.b16 %v374, %v373
  %v385 = vpack.c.b16 %v376, %v375
  %v386 = vpack.c.b16 %v378, %v377
  %395 = vmatprep.subr.bf16.mxu0 0
  %396 = vmatpush1.bf16.msra.mxu0 %v379
  %397 = vmatprep.subr.bf16.mxu0 0
  %398 = vmatpush1.bf16.msra.mxu0 %v380
  %399 = vmatprep.subr.bf16.mxu0 0
  %400 = vmatpush1.bf16.msra.mxu0 %v381
  %401 = vmatprep.subr.bf16.mxu0 0
  %402 = vmatpush1.bf16.msra.mxu0 %v382
  %403 = vmatprep.subr.bf16.mxu0 0
  %404 = vmatpush1.bf16.msra.mxu0 %v383
  %405 = vmatprep.subr.bf16.mxu0 0
  %406 = vmatpush1.bf16.msra.mxu0 %v384
  %407 = vmatprep.subr.bf16.mxu0 0
  %408 = vmatpush1.bf16.msra.mxu0 %v385
  %409 = vmatprep.subr.bf16.mxu0 0
  %410 = vmatpush1.bf16.msra.mxu0 %v386
  %411 = vmatprep.subr.bf16.mxu0 0
  %412 = vmatpush1.bf16.msra.mxu0 0
  %413 = vmatprep.subr.bf16.mxu0 0
  %414 = vmatpush1.bf16.msra.mxu0 0
  %415 = vmatprep.subr.bf16.mxu0 0
  %416 = vmatpush1.bf16.msra.mxu0 0
  %417 = vmatprep.subr.bf16.mxu0 0
  %418 = vmatpush1.bf16.msra.mxu0 0
  %419 = vmatprep.subr.bf16.mxu0 0
  %420 = vmatpush1.bf16.msra.mxu0 0
  %421 = vmatprep.subr.bf16.mxu0 0
  %422 = vmatpush1.bf16.msra.mxu0 0
  %423 = vmatprep.subr.bf16.mxu0 0
  %424 = vmatpush1.bf16.msra.mxu0 0
  %425 = vmatprep.subr.bf16.mxu0 0
  %426 = vmatpush1.bf16.msra.mxu0 0
  %427 = vmatprep.mubr.bf16.mxu0 0
  %428 = vmatmul.mubr.bf16.gmra.mrb[0].mxu0 %v197
  %v429 = vpop.f32.mrb[0].mxu0
  %v430 = vadd.f32 %v325, %v429
  %v431 = vpop.f32.mrb[0].mxu0
  %v432 = vpop.f32.mrb[0].mxu0
  %v433 = vadd.f32 %v328, %v432
  %v434 = vpop.f32.mrb[0].mxu0
  %435 = vmatprep.mubr.bf16.mxu0 0
  %436 = vmatmul.mubr.bf16.gmra.mrb[0].mxu0 %v198
  %v437 = vpop.f32.mrb[0].mxu0
  %v438 = vadd.f32 %v333, %v437
  %v439 = vpop.f32.mrb[0].mxu0
  %v440 = vpop.f32.mrb[0].mxu0
  %v441 = vadd.f32 %v336, %v440
  %v442 = vpop.f32.mrb[0].mxu0
  %443 = vmatprep.mubr.bf16.mxu0 0
  %444 = vmatmul.mubr.bf16.gmra.mrb[0].mxu0 %v199
  %v445 = vpop.f32.mrb[0].mxu0
  %v446 = vadd.f32 %v341, %v445
  %v447 = vpop.f32.mrb[0].mxu0
  %v448 = vpop.f32.mrb[0].mxu0
  %v449 = vadd.f32 %v344, %v448
  %v450 = vpop.f32.mrb[0].mxu0
  %451 = vdwg.mxu0
  %v452 = vld [vmem:[#allocation2 + $0x2] sm:$0xff]
  %v453 = vld [vmem:[#allocation2 + $0xa] sm:$0xff]
  %v454 = vld [vmem:[#allocation2 + $0x12] sm:$0xff]
  %v455 = vld [vmem:[#allocation2 + $0x1a] sm:$0xff]
  %v456 = vld [vmem:[#allocation2 + $0x22] sm:$0xff]
  %v457 = vld [vmem:[#allocation2 + $0x2a] sm:$0x3f]
  %v458 = vpack.c.bf16 %v453, %v452
  %v459 = vpack.c.bf16 %v455, %v454
  %v460 = vpack.c.bf16 %v457, %v456
  %s461 = scalar_lea.vmem %s2, 128
  %v462 = vld [vmem:[%s461] sm:$0xf]
  %v463 = vld [vmem:[%s461 + $0x4] sm:$0xf]
  %v464 = vld [vmem:[%s461 + $0x8] sm:$0xf]
  %v465 = vld [vmem:[%s461 + $0xc] sm:$0xf]
  %v466 = vld [vmem:[%s461 + $0x10] sm:$0xf]
  %v467 = vld [vmem:[%s461 + $0x14] sm:$0xf]
  %v468 = vld [vmem:[%s461 + $0x18] sm:$0xf]
  %v469 = vld [vmem:[%s461 + $0x1c] sm:$0xf]
  %v470 = vld [vmem:[%s461 + $0x20] sm:$0xf]
  %v471 = vld [vmem:[%s461 + $0x24] sm:$0xf]
  %v472 = vld [vmem:[%s461 + $0x28] sm:$0xf]
  %v473 = vld [vmem:[%s461 + $0x2c] sm:$0xf]
  %v474 = vld [vmem:[%s461 + $0x30] sm:$0xf]
  %v475 = vld [vmem:[%s461 + $0x34] sm:$0xf]
  %v476 = vld [vmem:[%s461 + $0x38] sm:$0xf]
  %v477 = vld [vmem:[%s461 + $0x3c] sm:$0xf]
  %v494 = vunpack.c.l.b16 %v462
  %v495 = vunpack.c.l.b16 %v463
  %v496 = vunpack.c.l.b16 %v464
  %v497 = vunpack.c.l.b16 %v465
  %v498 = vunpack.c.l.b16 %v466
  %v499 = vunpack.c.l.b16 %v467
  %v500 = vunpack.c.l.b16 %v468
  %v501 = vunpack.c.l.b16 %v469
  %v502 = vunpack.c.l.b16 %v470
  %v503 = vunpack.c.l.b16 %v471
  %v504 = vunpack.c.l.b16 %v472
  %v505 = vunpack.c.l.b16 %v473
  %v506 = vunpack.c.l.b16 %v474
  %v507 = vunpack.c.l.b16 %v475
  %v508 = vunpack.c.l.b16 %v476
  %v509 = vunpack.c.l.b16 %v477
  %v510 = vpack.c.b16 %v495, %v494
  %v511 = vpack.c.b16 %v497, %v496
  %v512 = vpack.c.b16 %v499, %v498
  %v513 = vpack.c.b16 %v501, %v500
  %v514 = vpack.c.b16 %v503, %v502
  %v515 = vpack.c.b16 %v505, %v504
  %v516 = vpack.c.b16 %v507, %v506
  %v517 = vpack.c.b16 %v509, %v508
  %526 = vmatprep.subr.bf16.mxu0 0
  %527 = vmatpush1.bf16.msra.mxu0 %v510
  %528 = vmatprep.subr.bf16.mxu0 0
  %529 = vmatpush1.bf16.msra.mxu0 %v511
  %530 = vmatprep.subr.bf16.mxu0 0
  %531 = vmatpush1.bf16.msra.mxu0 %v512
  %532 = vmatprep.subr.bf16.mxu0 0
  %533 = vmatpush1.bf16.msra.mxu0 %v513
  %534 = vmatprep.subr.bf16.mxu0 0
  %535 = vmatpush1.bf16.msra.mxu0 %v514
  %536 = vmatprep.subr.bf16.mxu0 0
  %537 = vmatpush1.bf16.msra.mxu0 %v515
  %538 = vmatprep.subr.bf16.mxu0 0
  %539 = vmatpush1.bf16.msra.mxu0 %v516
  %540 = vmatprep.subr.bf16.mxu0 0
  %541 = vmatpush1.bf16.msra.mxu0 %v517
  %542 = vmatprep.subr.bf16.mxu0 0
  %543 = vmatpush1.bf16.msra.mxu0 0
  %544 = vmatprep.subr.bf16.mxu0 0
  %545 = vmatpush1.bf16.msra.mxu0 0
  %546 = vmatprep.subr.bf16.mxu0 0
  %547 = vmatpush1.bf16.msra.mxu0 0
  %548 = vmatprep.subr.bf16.mxu0 0
  %549 = vmatpush1.bf16.msra.mxu0 0
  %550 = vmatprep.subr.bf16.mxu0 0
  %551 = vmatpush1.bf16.msra.mxu0 0
  %552 = vmatprep.subr.bf16.mxu0 0
  %553 = vmatpush1.bf16.msra.mxu0 0
  %554 = vmatprep.subr.bf16.mxu0 0
  %555 = vmatpush1.bf16.msra.mxu0 0
  %556 = vmatprep.subr.bf16.mxu0 0
  %557 = vmatpush1.bf16.msra.mxu0 0
  %558 = vmatprep.mubr.bf16.mxu0 0
  %559 = vmatmul.mubr.bf16.gmra.mrb[0].mxu0 %v458
  %v560 = vpop.f32.mrb[0].mxu0
  %v561 = vadd.f32 0.0, %v560
  %v562 = vpop.f32.mrb[0].mxu0
  %v563 = vpop.f32.mrb[0].mxu0
  %v564 = vadd.f32 0.0, %v563
  %v565 = vpop.f32.mrb[0].mxu0
  %566 = vmatprep.mubr.bf16.mxu0 0
  %567 = vmatmul.mubr.bf16.gmra.mrb[0].mxu0 %v459
  %v568 = vpop.f32.mrb[0].mxu0
  %v569 = vadd.f32 0.0, %v568
  %v570 = vpop.f32.mrb[0].mxu0
  %v571 = vpop.f32.mrb[0].mxu0
  %v572 = vadd.f32 0.0, %v571
  %v573 = vpop.f32.mrb[0].mxu0
  %574 = vmatprep.mubr.bf16.mxu0 0
  %575 = vmatmul.mubr.bf16.gmra.mrb[0].mxu0 %v460
  %v576 = vpop.f32.mrb[0].mxu0
  %v577 = vadd.f32 0.0, %v576
  %v578 = vpop.f32.mrb[0].mxu0
  %v579 = vpop.f32.mrb[0].mxu0
  %v580 = vadd.f32 0.0, %v579
  %v581 = vpop.f32.mrb[0].mxu0
  %582 = vdwg.mxu0
  %v583 = vadd.f32 %v430, %v561
  %v584 = vadd.f32 %v433, %v564
  %v585 = vadd.f32 %v438, %v569
  %v586 = vadd.f32 %v441, %v572
  %v587 = vadd.f32 %v446, %v577
  %v588 = vadd.f32 %v449, %v580
  %v589 = vld [vmem:[%s4 + $0x1] sm:$0x1]
  %v590 = vlaneseq
  %v591 = vshrl.u32 %v590, 7
  %v592 = vsub.s32 0, %v591
  %v593 = vrot.slane %v589, %v592
  %v594 = vadd.f32 %v583, %v593
  %v595 = vadd.f32 %v584, %v593
  %v596 = vadd.f32 %v585, %v593
  %v597 = vadd.f32 %v586, %v593
  %v598 = vadd.f32 %v587, %v593
  %v599 = vadd.f32 %v588, %v593
  %v600 = vmax.f32 %v594, 0.0
  %v601 = vmax.f32 %v595, 0.0
  %v602 = vmax.f32 %v596, 0.0
  %v603 = vmax.f32 %v597, 0.0
  %v604 = vmax.f32 %v598, 0.0
  %v605 = vmax.f32 %v599, 0.0
  %vm612 = vcmask 1040384
  %v613 = vrot.slane %v600, 7
  %v614 = vrot.slane %v601, 7
  %v615 = vsel %vm612, %v613, %v614
  %v616 = vrot.slane %v602, 7
  %v617 = vsel %vm612, %v614, %v616
  %v618 = vrot.slane %v603, 7
  %v619 = vsel %vm612, %v616, %v618
  %v620 = vrot.slane %v604, 7
  %v621 = vsel %vm612, %v618, %v620
  %v622 = vrot.slane %v605, 7
  %v623 = vsel %vm612, %v620, %v622
  %v630 = vadd.f32 %v179, %v613
  %v631 = vadd.f32 %v180, %v615
  %v632 = vadd.f32 %v181, %v617
  %v633 = vadd.f32 %v182, %v619
  %v634 = vadd.f32 %v183, %v621
  %v635 = vadd.f32 %v184, %v623
  %v636 = vmul.f32 %v630, %v152
  %v637 = vmul.f32 %v631, %v157
  %v638 = vmul.f32 %v632, %v162
  %v639 = vmul.f32 %v633, %v167
  %v640 = vmul.f32 %v634, %v172
  %v641 = vmul.f32 %v635, %v177
  %642 = vst [vmem:[#allocation2] sm:$0xfe] %v636
  %643 = vst [vmem:[#allocation2 + $0x8] sm:$0xff] %v637
  %644 = vst [vmem:[#allocation2 + $0x10] sm:$0xff] %v638
  %645 = vst [vmem:[#allocation2 + $0x18] sm:$0xff] %v639
  %646 = vst [vmem:[#allocation2 + $0x20] sm:$0xff] %v640
  %647 = vst [vmem:[#allocation2 + $0x28] sm:$0x7f] %v641
  %v648 = vld [vmem:[#allocation2] sm:$0xff]
  %v649 = vld [vmem:[#allocation2 + $0x8] sm:$0xff]
  %v650 = vld [vmem:[#allocation2 + $0x10] sm:$0xff]
  %v651 = vld [vmem:[#allocation2 + $0x18] sm:$0xff]
  %v652 = vld [vmem:[#allocation2 + $0x20] sm:$0xff]
  %v653 = vld [vmem:[#allocation2 + $0x28] sm:$0x3f]
  %v654 = vpack.c.bf16 %v649, %v648
  %v655 = vpack.c.bf16 %v651, %v650
  %v656 = vpack.c.bf16 %v653, %v652
  %v657 = vld [vmem:[%s3] sm:$0xf]
  %v658 = vld [vmem:[%s3 + $0x4] sm:$0xf]
  %v659 = vld [vmem:[%s3 + $0x8] sm:$0xf]
  %v660 = vld [vmem:[%s3 + $0xc] sm:$0xf]
  %v661 = vld [vmem:[%s3 + $0x10] sm:$0xf]
  %v662 = vld [vmem:[%s3 + $0x14] sm:$0xf]
  %v663 = vld [vmem:[%s3 + $0x18] sm:$0xf]
  %v664 = vld [vmem:[%s3 + $0x1c] sm:$0xf]
  %v665 = vld [vmem:[%s3 + $0x20] sm:$0xf]
  %v666 = vld [vmem:[%s3 + $0x24] sm:$0xf]
  %v667 = vld [vmem:[%s3 + $0x28] sm:$0xf]
  %v668 = vld [vmem:[%s3 + $0x2c] sm:$0xf]
  %v669 = vld [vmem:[%s3 + $0x30] sm:$0xf]
  %v670 = vld [vmem:[%s3 + $0x34] sm:$0xf]
  %v671 = vld [vmem:[%s3 + $0x38] sm:$0xf]
  %v672 = vld [vmem:[%s3 + $0x3c] sm:$0xf]
  %v673 = vld [vmem:[#allocation2 + $0x1] sm:$0xff]
  %v674 = vld [vmem:[#allocation2 + $0x9] sm:$0xff]
  %v675 = vld [vmem:[#allocation2 + $0x11] sm:$0xff]
  %v676 = vld [vmem:[#allocation2 + $0x19] sm:$0xff]
  %v677 = vld [vmem:[#allocation2 + $0x21] sm:$0xff]
  %v678 = vld [vmem:[#allocation2 + $0x29] sm:$0x3f]
  %v679 = vpack.c.bf16 %v674, %v673
  %v680 = vpack.c.bf16 %v676, %v675
  %v681 = vpack.c.bf16 %v678, %v677
  %s682 = scalar_lea.vmem %s3, 64
  %v683 = vld [vmem:[%s682] sm:$0xf]
  %v684 = vld [vmem:[%s682 + $0x4] sm:$0xf]
  %v685 = vld [vmem:[%s682 + $0x8] sm:$0xf]
  %v686 = vld [vmem:[%s682 + $0xc] sm:$0xf]
  %v687 = vld [vmem:[%s682 + $0x10] sm:$0xf]
  %v688 = vld [vmem:[%s682 + $0x14] sm:$0xf]
  %v689 = vld [vmem:[%s682 + $0x18] sm:$0xf]
  %v690 = vld [vmem:[%s682 + $0x1c] sm:$0xf]
  %v691 = vld [vmem:[%s682 + $0x20] sm:$0xf]
  %v692 = vld [vmem:[%s682 + $0x24] sm:$0xf]
  %v693 = vld [vmem:[%s682 + $0x28] sm:$0xf]
  %v694 = vld [vmem:[%s682 + $0x2c] sm:$0xf]
  %v695 = vld [vmem:[%s682 + $0x30] sm:$0xf]
  %v696 = vld [vmem:[%s682 + $0x34] sm:$0xf]
  %v697 = vld [vmem:[%s682 + $0x38] sm:$0xf]
  %v698 = vld [vmem:[%s682 + $0x3c] sm:$0xf]
  %v715 = vunpack.c.l.b16 %v683
  %v716 = vunpack.c.l.b16 %v684
  %v717 = vunpack.c.l.b16 %v685
  %v718 = vunpack.c.l.b16 %v686
  %v719 = vunpack.c.l.b16 %v687
  %v720 = vunpack.c.l.b16 %v688
  %v721 = vunpack.c.l.b16 %v689
  %v722 = vunpack.c.l.b16 %v690
  %v723 = vunpack.c.l.b16 %v691
  %v724 = vunpack.c.l.b16 %v692
  %v725 = vunpack.c.l.b16 %v693
  %v726 = vunpack.c.l.b16 %v694
  %v727 = vunpack.c.l.b16 %v695
  %v728 = vunpack.c.l.b16 %v696
  %v729 = vunpack.c.l.b16 %v697
  %v730 = vunpack.c.l.b16 %v698
  %v731 = vpack.c.b16 %v716, %v715
  %v732 = vpack.c.b16 %v718, %v717
  %v733 = vpack.c.b16 %v720, %v719
  %v734 = vpack.c.b16 %v722, %v721
  %v735 = vpack.c.b16 %v724, %v723
  %v736 = vpack.c.b16 %v726, %v725
  %v737 = vpack.c.b16 %v728, %v727
  %v738 = vpack.c.b16 %v730, %v729
  %747 = vmatprep.subr.bf16.mxu0 0
  %748 = vmatpush1.bf16.msra.mxu0 %v731
  %749 = vmatprep.subr.bf16.mxu0 0
  %750 = vmatpush1.bf16.msra.mxu0 %v732
  %751 = vmatprep.subr.bf16.mxu0 0
  %752 = vmatpush1.bf16.msra.mxu0 %v733
  %753 = vmatprep.subr.bf16.mxu0 0
  %754 = vmatpush1.bf16.msra.mxu0 %v734
  %755 = vmatprep.subr.bf16.mxu0 0
  %756 = vmatpush1.bf16.msra.mxu0 %v735
  %757 = vmatprep.subr.bf16.mxu0 0
  %758 = vmatpush1.bf16.msra.mxu0 %v736
  %759 = vmatprep.subr.bf16.mxu0 0
  %760 = vmatpush1.bf16.msra.mxu0 %v737
  %761 = vmatprep.subr.bf16.mxu0 0
  %762 = vmatpush1.bf16.msra.mxu0 %v738
  %763 = vmatprep.subr.bf16.mxu0 0
  %764 = vmatpush1.bf16.msra.mxu0 0
  %765 = vmatprep.subr.bf16.mxu0 0
  %766 = vmatpush1.bf16.msra.mxu0 0
  %767 = vmatprep.subr.bf16.mxu0 0
  %768 = vmatpush1.bf16.msra.mxu0 0
  %769 = vmatprep.subr.bf16.mxu0 0
  %770 = vmatpush1.bf16.msra.mxu0 0
  %771 = vmatprep.subr.bf16.mxu0 0
  %772 = vmatpush1.bf16.msra.mxu0 0
  %773 = vmatprep.subr.bf16.mxu0 0
  %774 = vmatpush1.bf16.msra.mxu0 0
  %775 = vmatprep.subr.bf16.mxu0 0
  %776 = vmatpush1.bf16.msra.mxu0 0
  %777 = vmatprep.subr.bf16.mxu0 0
  %778 = vmatpush1.bf16.msra.mxu0 0
  %779 = vmatprep.mubr.bf16.mxu0 0
  %780 = vmatmul.mubr.bf16.gmra.mrb[0].mxu0 %v679
  %v781 = vpop.f32.mrb[0].mxu0
  %v782 = vadd.f32 0.0, %v781
  %v783 = vpop.f32.mrb[0].mxu0
  %v784 = vpop.f32.mrb[0].mxu0
  %v785 = vadd.f32 0.0, %v784
  %v786 = vpop.f32.mrb[0].mxu0
  %787 = vmatprep.mubr.bf16.mxu0 0
  %788 = vmatmul.mubr.bf16.gmra.mrb[0].mxu0 %v680
  %v789 = vpop.f32.mrb[0].mxu0
  %v790 = vadd.f32 0.0, %v789
  %v791 = vpop.f32.mrb[0].mxu0
  %v792 = vpop.f32.mrb[0].mxu0
  %v793 = vadd.f32 0.0, %v792
  %v794 = vpop.f32.mrb[0].mxu0
  %795 = vmatprep.mubr.bf16.mxu0 0
  %796 = vmatmul.mubr.bf16.gmra.mrb[0].mxu0 %v681
  %v797 = vpop.f32.mrb[0].mxu0
  %v798 = vadd.f32 0.0, %v797
  %v799 = vpop.f32.mrb[0].mxu0
  %v800 = vpop.f32.mrb[0].mxu0
  %v801 = vadd.f32 0.0, %v800
  %v802 = vpop.f32.mrb[0].mxu0
  %803 = vdwg.mxu0
  %v820 = vunpack.c.l.b16 %v657
  %v821 = vunpack.c.l.b16 %v658
  %v822 = vunpack.c.l.b16 %v659
  %v823 = vunpack.c.l.b16 %v660
  %v824 = vunpack.c.l.b16 %v661
  %v825 = vunpack.c.l.b16 %v662
  %v826 = vunpack.c.l.b16 %v663
  %v827 = vunpack.c.l.b16 %v664
  %v828 = vunpack.c.l.b16 %v665
  %v829 = vunpack.c.l.b16 %v666
  %v830 = vunpack.c.l.b16 %v667
  %v831 = vunpack.c.l.b16 %v668
  %v832 = vunpack.c.l.b16 %v669
  %v833 = vunpack.c.l.b16 %v670
  %v834 = vunpack.c.l.b16 %v671
  %v835 = vunpack.c.l.b16 %v672
  %v836 = vpack.c.b16 %v821, %v820
  %v837 = vpack.c.b16 %v823, %v822
  %v838 = vpack.c.b16 %v825, %v824
  %v839 = vpack.c.b16 %v827, %v826
  %v840 = vpack.c.b16 %v829, %v828
  %v841 = vpack.c.b16 %v831, %v830
  %v842 = vpack.c.b16 %v833, %v832
  %v843 = vpack.c.b16 %v835, %v834
  %852 = vmatprep.subr.bf16.mxu0 0
  %853 = vmatpush1.bf16.msra.mxu0 %v836
  %854 = vmatprep.subr.bf16.mxu0 0
  %855 = vmatpush1.bf16.msra.mxu0 %v837
  %856 = vmatprep.subr.bf16.mxu0 0
  %857 = vmatpush1.bf16.msra.mxu0 %v838
  %858 = vmatprep.subr.bf16.mxu0 0
  %859 = vmatpush1.bf16.msra.mxu0 %v839
  %860 = vmatprep.subr.bf16.mxu0 0
  %861 = vmatpush1.bf16.msra.mxu0 %v840
  %862 = vmatprep.subr.bf16.mxu0 0
  %863 = vmatpush1.bf16.msra.mxu0 %v841
  %864 = vmatprep.subr.bf16.mxu0 0
  %865 = vmatpush1.bf16.msra.mxu0 %v842
  %866 = vmatprep.subr.bf16.mxu0 0
  %867 = vmatpush1.bf16.msra.mxu0 %v843
  %868 = vmatprep.subr.bf16.mxu0 0
  %869 = vmatpush1.bf16.msra.mxu0 0
  %870 = vmatprep.subr.bf16.mxu0 0
  %871 = vmatpush1.bf16.msra.mxu0 0
  %872 = vmatprep.subr.bf16.mxu0 0
  %873 = vmatpush1.bf16.msra.mxu0 0
  %874 = vmatprep.subr.bf16.mxu0 0
  %875 = vmatpush1.bf16.msra.mxu0 0
  %876 = vmatprep.subr.bf16.mxu0 0
  %877 = vmatpush1.bf16.msra.mxu0 0
  %878 = vmatprep.subr.bf16.mxu0 0
  %879 = vmatpush1.bf16.msra.mxu0 0
  %880 = vmatprep.subr.bf16.mxu0 0
  %881 = vmatpush1.bf16.msra.mxu0 0
  %882 = vmatprep.subr.bf16.mxu0 0
  %883 = vmatpush1.bf16.msra.mxu0 0
  %884 = vmatprep.mubr.bf16.mxu0 0
  %885 = vmatmul.mubr.bf16.gmra.mrb[0].mxu0 %v654
  %v886 = vpop.f32.mrb[0].mxu0
  %v887 = vadd.f32 %v782, %v886
  %v888 = vpop.f32.mrb[0].mxu0
  %v889 = vpop.f32.mrb[0].mxu0
  %v890 = vadd.f32 %v785, %v889
  %v891 = vpop.f32.mrb[0].mxu0
  %892 = vmatprep.mubr.bf16.mxu0 0
  %893 = vmatmul.mubr.bf16.gmra.mrb[0].mxu0 %v655
  %v894 = vpop.f32.mrb[0].mxu0
  %v895 = vadd.f32 %v790, %v894
  %v896 = vpop.f32.mrb[0].mxu0
  %v897 = vpop.f32.mrb[0].mxu0
  %v898 = vadd.f32 %v793, %v897
  %v899 = vpop.f32.mrb[0].mxu0
  %900 = vmatprep.mubr.bf16.mxu0 0
  %901 = vmatmul.mubr.bf16.gmra.mrb[0].mxu0 %v656
  %v902 = vpop.f32.mrb[0].mxu0
  %v903 = vadd.f32 %v798, %v902
  %v904 = vpop.f32.mrb[0].mxu0
  %v905 = vpop.f32.mrb[0].mxu0
  %v906 = vadd.f32 %v801, %v905
  %v907 = vpop.f32.mrb[0].mxu0
  %908 = vdwg.mxu0
  %v909 = vld [vmem:[#allocation2 + $0x2] sm:$0xff]
  %v910 = vld [vmem:[#allocation2 + $0xa] sm:$0xff]
  %v911 = vld [vmem:[#allocation2 + $0x12] sm:$0xff]
  %v912 = vld [vmem:[#allocation2 + $0x1a] sm:$0xff]
  %v913 = vld [vmem:[#allocation2 + $0x22] sm:$0xff]
  %v914 = vld [vmem:[#allocation2 + $0x2a] sm:$0x3f]
  %v915 = vpack.c.bf16 %v910, %v909
  %v916 = vpack.c.bf16 %v912, %v911
  %v917 = vpack.c.bf16 %v914, %v913
  %s918 = scalar_lea.vmem %s3, 128
  %v919 = vld [vmem:[%s918] sm:$0xf]
  %v920 = vld [vmem:[%s918 + $0x4] sm:$0xf]
  %v921 = vld [vmem:[%s918 + $0x8] sm:$0xf]
  %v922 = vld [vmem:[%s918 + $0xc] sm:$0xf]
  %v923 = vld [vmem:[%s918 + $0x10] sm:$0xf]
  %v924 = vld [vmem:[%s918 + $0x14] sm:$0xf]
  %v925 = vld [vmem:[%s918 + $0x18] sm:$0xf]
  %v926 = vld [vmem:[%s918 + $0x1c] sm:$0xf]
  %v927 = vld [vmem:[%s918 + $0x20] sm:$0xf]
  %v928 = vld [vmem:[%s918 + $0x24] sm:$0xf]
  %v929 = vld [vmem:[%s918 + $0x28] sm:$0xf]
  %v930 = vld [vmem:[%s918 + $0x2c] sm:$0xf]
  %v931 = vld [vmem:[%s918 + $0x30] sm:$0xf]
  %v932 = vld [vmem:[%s918 + $0x34] sm:$0xf]
  %v933 = vld [vmem:[%s918 + $0x38] sm:$0xf]
  %v934 = vld [vmem:[%s918 + $0x3c] sm:$0xf]
  %v951 = vunpack.c.l.b16 %v919
  %v952 = vunpack.c.l.b16 %v920
  %v953 = vunpack.c.l.b16 %v921
  %v954 = vunpack.c.l.b16 %v922
  %v955 = vunpack.c.l.b16 %v923
  %v956 = vunpack.c.l.b16 %v924
  %v957 = vunpack.c.l.b16 %v925
  %v958 = vunpack.c.l.b16 %v926
  %v959 = vunpack.c.l.b16 %v927
  %v960 = vunpack.c.l.b16 %v928
  %v961 = vunpack.c.l.b16 %v929
  %v962 = vunpack.c.l.b16 %v930
  %v963 = vunpack.c.l.b16 %v931
  %v964 = vunpack.c.l.b16 %v932
  %v965 = vunpack.c.l.b16 %v933
  %v966 = vunpack.c.l.b16 %v934
  %v967 = vpack.c.b16 %v952, %v951
  %v968 = vpack.c.b16 %v954, %v953
  %v969 = vpack.c.b16 %v956, %v955
  %v970 = vpack.c.b16 %v958, %v957
  %v971 = vpack.c.b16 %v960, %v959
  %v972 = vpack.c.b16 %v962, %v961
  %v973 = vpack.c.b16 %v964, %v963
  %v974 = vpack.c.b16 %v966, %v965
  %983 = vmatprep.subr.bf16.mxu0 0
  %984 = vmatpush1.bf16.msra.mxu0 %v967
  %985 = vmatprep.subr.bf16.mxu0 0
  %986 = vmatpush1.bf16.msra.mxu0 %v968
  %987 = vmatprep.subr.bf16.mxu0 0
  %988 = vmatpush1.bf16.msra.mxu0 %v969
  %989 = vmatprep.subr.bf16.mxu0 0
  %990 = vmatpush1.bf16.msra.mxu0 %v970
  %991 = vmatprep.subr.bf16.mxu0 0
  %992 = vmatpush1.bf16.msra.mxu0 %v971
  %993 = vmatprep.subr.bf16.mxu0 0
  %994 = vmatpush1.bf16.msra.mxu0 %v972
  %995 = vmatprep.subr.bf16.mxu0 0
  %996 = vmatpush1.bf16.msra.mxu0 %v973
  %997 = vmatprep.subr.bf16.mxu0 0
  %998 = vmatpush1.bf16.msra.mxu0 %v974
  %999 = vmatprep.subr.bf16.mxu0 0
  %1000 = vmatpush1.bf16.msra.mxu0 0
  %1001 = vmatprep.subr.bf16.mxu0 0
  %1002 = vmatpush1.bf16.msra.mxu0 0
  %1003 = vmatprep.subr.bf16.mxu0 0
  %1004 = vmatpush1.bf16.msra.mxu0 0
  %1005 = vmatprep.subr.bf16.mxu0 0
  %1006 = vmatpush1.bf16.msra.mxu0 0
  %1007 = vmatprep.subr.bf16.mxu0 0
  %1008 = vmatpush1.bf16.msra.mxu0 0
  %1009 = vmatprep.subr.bf16.mxu0 0
  %1010 = vmatpush1.bf16.msra.mxu0 0
  %1011 = vmatprep.subr.bf16.mxu0 0
  %1012 = vmatpush1.bf16.msra.mxu0 0
  %1013 = vmatprep.subr.bf16.mxu0 0
  %1014 = vmatpush1.bf16.msra.mxu0 0
  %1015 = vmatprep.mubr.bf16.mxu0 0
  %1016 = vmatmul.mubr.bf16.gmra.mrb[0].mxu0 %v915
  %v1017 = vpop.f32.mrb[0].mxu0
  %v1018 = vadd.f32 0.0, %v1017
  %v1019 = vpop.f32.mrb[0].mxu0
  %v1020 = vpop.f32.mrb[0].mxu0
  %v1021 = vadd.f32 0.0, %v1020
  %v1022 = vpop.f32.mrb[0].mxu0
  %1023 = vmatprep.mubr.bf16.mxu0 0
  %1024 = vmatmul.mubr.bf16.gmra.mrb[0].mxu0 %v916
  %v1025 = vpop.f32.mrb[0].mxu0
  %v1026 = vadd.f32 0.0, %v1025
  %v1027 = vpop.f32.mrb[0].mxu0
  %v1028 = vpop.f32.mrb[0].mxu0
  %v1029 = vadd.f32 0.0, %v1028
  %v1030 = vpop.f32.mrb[0].mxu0
  %1031 = vmatprep.mubr.bf16.mxu0 0
  %1032 = vmatmul.mubr.bf16.gmra.mrb[0].mxu0 %v917
  %v1033 = vpop.f32.mrb[0].mxu0
  %v1034 = vadd.f32 0.0, %v1033
  %v1035 = vpop.f32.mrb[0].mxu0
  %v1036 = vpop.f32.mrb[0].mxu0
  %v1037 = vadd.f32 0.0, %v1036
  %v1038 = vpop.f32.mrb[0].mxu0
  %1039 = vdwg.mxu0
  %v1040 = vadd.f32 %v887, %v1018
  %v1041 = vadd.f32 %v890, %v1021
  %v1042 = vadd.f32 %v895, %v1026
  %v1043 = vadd.f32 %v898, %v1029
  %v1044 = vadd.f32 %v903, %v1034
  %v1045 = vadd.f32 %v906, %v1037
  %v1046 = vld [vmem:[%s4 + $0x2] sm:$0x1]
  %v1047 = vlaneseq
  %v1048 = vshrl.u32 %v1047, 7
  %v1049 = vsub.s32 0, %v1048
  %v1050 = vrot.slane %v1046, %v1049
  %v1051 = vadd.f32 %v1040, %v1050
  %v1052 = vadd.f32 %v1041, %v1050
  %v1053 = vadd.f32 %v1042, %v1050
  %v1054 = vadd.f32 %v1043, %v1050
  %v1055 = vadd.f32 %v1044, %v1050
  %v1056 = vadd.f32 %v1045, %v1050
  %v1057 = vmax.f32 %v1051, 0.0
  %v1058 = vmax.f32 %v1052, 0.0
  %v1059 = vmax.f32 %v1053, 0.0
  %v1060 = vmax.f32 %v1054, 0.0
  %v1061 = vmax.f32 %v1055, 0.0
  %v1062 = vmax.f32 %v1056, 0.0
  %1063 = vst [vmem:[%s6] sm:$0xff] %v1057
  %1064 = vst [vmem:[%s6 + $0x8] sm:$0xff] %v1058
  %1065 = vst [vmem:[%s6 + $0x10] sm:$0xff] %v1059
  %1066 = vst [vmem:[%s6 + $0x18] sm:$0xff] %v1060
  %1067 = vst [vmem:[%s6 + $0x20] sm:$0xff] %v1061
  %1068 = vst [vmem:[%s6 + $0x28] sm:$0x3f] %v1062
  // Predicated region
  $region26: #{sq_out_forward.1} parent=0 // pred_check
    _
  $region27: #{sq_out_forward.1} parent=0 // pred_check_branch
    %1070 = sbr.rel (0) target = $region29
  $region28: #{sq_out_forward.1} parent=0 // pred_region
    _
  $region29: #{sq_out_forward.1} parent=0 // pred_fallthru
    _
  // Predicated region
  $region30: #{sq_out_forward.1} parent=0 // pred_check
    _
  $region31: #{sq_out_forward.1} parent=0 // pred_check_branch
    %1072 = sbr.rel (0) target = $region33
  $region32: #{sq_out_forward.1} parent=0 // pred_region
    _
  $region33: #{sq_out_forward.1} parent=0 // pred_fallthru
    _

</llo_original>
